<compile_context>
chip_gen: v6e
topology: v6e:2x2x1
jax: 0.10.0
libtpu: 0.0.40
codegen_flags: <defaults>
</compile_context>

<pallas_src>
import math

import jax
import jax.numpy as jnp
from jax.experimental import pallas as pl
from jax.experimental.pallas import tpu as pltpu


def _round_up(x, m):
    return ((x + m - 1) // m) * m


def _largest_dividing(dim, candidates):
    for c in candidates:
        if dim % c == 0:
            return c
    raise ValueError(f"no candidate in {candidates} divides {dim}")


# ---------------------------------------------------------------------------
# Kernels
# ---------------------------------------------------------------------------
# Single K-step (whole reduction resident): no accumulator scratch, the MXU
# result (+ bias) is written straight to the output tile.
def _mm_single_kernel(a_ref, b_ref, o_ref):
    o_ref[...] = jnp.dot(a_ref[...], b_ref[...],
                         preferred_element_type=jnp.float32).astype(o_ref.dtype)


def _mm_bias_single_kernel(a_ref, b_ref, bias_ref, o_ref):
    o_ref[...] = (jnp.dot(a_ref[...], b_ref[...],
                          preferred_element_type=jnp.float32)
                  + bias_ref[...]).astype(o_ref.dtype)


# Multi K-step: f32 VMEM accumulator.  First step writes (no zero-init pass),
# later steps accumulate, last step casts/stores (and adds bias exactly once).
def _mm_multi_kernel(a_ref, b_ref, o_ref, acc_ref):
    k = pl.program_id(2)
    part = jnp.dot(a_ref[...], b_ref[...], preferred_element_type=jnp.float32)

    @pl.when(k == 0)
    def _():
        acc_ref[...] = part

    @pl.when(k != 0)
    def _():
        acc_ref[...] += part

    @pl.when(k == pl.num_programs(2) - 1)
    def _():
        o_ref[...] = acc_ref[...].astype(o_ref.dtype)


def _mm_bias_multi_kernel(a_ref, b_ref, bias_ref, o_ref, acc_ref):
    k = pl.program_id(2)
    part = jnp.dot(a_ref[...], b_ref[...], preferred_element_type=jnp.float32)

    @pl.when(k == 0)
    def _():
        acc_ref[...] = part

    @pl.when(k != 0)
    def _():
        acc_ref[...] += part

    @pl.when(k == pl.num_programs(2) - 1)
    def _():
        o_ref[...] = (acc_ref[...] + bias_ref[...]).astype(o_ref.dtype)


# ---------------------------------------------------------------------------
# Tiled matmul wrapper (optional fused bias add)
# ---------------------------------------------------------------------------
def _tiled_matmul(a, b, bias=None, *, tm, tn, tk, out_dtype):
    """C = A @ B (+ bias). A:(M,K), B:(K,N), bias:(1,N) f32 or None.

    M, N, K must be divisible by tm, tn, tk respectively (caller pads).
    """
    m, k = a.shape
    k2, n = b.shape
    assert k == k2 and m % tm == 0 and n % tn == 0 and k % tk == 0
    k_steps = k // tk

    flops = 2 * m * n * k
    # A is re-read once per output-column tile, B once per output-row tile.
    bytes_accessed = ((n // tn) * a.size * a.dtype.itemsize
                      + (m // tm) * b.size * b.dtype.itemsize
                      + m * n * jnp.dtype(out_dtype).itemsize)

    args = [a, b]
    if k_steps == 1:
        in_specs = [pl.BlockSpec((tm, tk), lambda i, j: (i, 0)),
                    pl.BlockSpec((tk, tn), lambda i, j: (0, j))]
        out_specs = pl.BlockSpec((tm, tn), lambda i, j: (i, j))
        if bias is not None:
            in_specs.append(pl.BlockSpec((1, tn), lambda i, j: (0, j)))
            args.append(bias)
            kernel = _mm_bias_single_kernel
        else:
            kernel = _mm_single_kernel
        grid = (m // tm, n // tn)
        scratch_shapes = []
        dims = ("parallel", "parallel")
    else:
        in_specs = [pl.BlockSpec((tm, tk), lambda i, j, kk: (i, kk)),
                    pl.BlockSpec((tk, tn), lambda i, j, kk: (kk, j))]
        out_specs = pl.BlockSpec((tm, tn), lambda i, j, kk: (i, j))
        if bias is not None:
            in_specs.append(pl.BlockSpec((1, tn), lambda i, j, kk: (0, j)))
            args.append(bias)
            kernel = _mm_bias_multi_kernel
        else:
            kernel = _mm_multi_kernel
        grid = (m // tm, n // tn, k_steps)
        scratch_shapes = [pltpu.VMEM((tm, tn), jnp.float32)]
        dims = ("parallel", "parallel", "arbitrary")

    return pl.pallas_call(
        kernel,
        out_shape=jax.ShapeDtypeStruct((m, n), out_dtype),
        grid_spec=pltpu.PrefetchScalarGridSpec(
            num_scalar_prefetch=0,
            grid=grid,
            in_specs=in_specs,
            out_specs=out_specs,
            scratch_shapes=scratch_shapes,
        ),
        compiler_params=pltpu.CompilerParams(
            dimension_semantics=dims,
            vmem_limit_bytes=48 * 1024 * 1024,
        ),
        cost_estimate=pl.CostEstimate(
            flops=flops, transcendentals=0, bytes_accessed=bytes_accessed),
    )(*args)


# ---------------------------------------------------------------------------
# GCN layer wrapper
# ---------------------------------------------------------------------------
def graph_convolution(adjacency, features, weight, bias=None):
    """Pallas GCN layer: adjacency @ (features @ weight) + bias."""
    N = adjacency.shape[0]
    f_in, f_out = weight.shape
    assert adjacency.shape == (N, N)
    assert features.shape == (N, f_in)

    # Padded problem sizes.  Node dim padded to a 512 multiple so 512-row
    # tiles always divide evenly; feature dims to 128 (lane-dense tiles and
    # unmasked vst epilogues).  Zero padding is exact: padded rows/cols
    # contribute 0 to every reduction and are sliced off at the end.
    n_p = _round_up(N, 512)
    fi_p = _round_up(f_in, 128)
    fo_p = _round_up(f_out, 128)

    # Everything stays f32: with the j/k axes collapsed below, the dominant
    # N x N adjacency stream is read exactly once, so an up-front bf16 cast
    # pass would *add* HBM traffic (read 4B + write 2B + read 2B per element
    # vs reading 4B once).
    a_p = jnp.pad(adjacency.astype(jnp.float32), ((0, n_p - N), (0, n_p - N)))
    x_p = jnp.pad(features.astype(jnp.float32), ((0, n_p - N), (0, fi_p - f_in)))
    w_p = jnp.pad(weight.astype(jnp.float32), ((0, fi_p - f_in), (0, fo_p - f_out)))
    bias_p = None
    if bias is not None:
        bias_p = jnp.pad(bias.astype(jnp.float32).reshape(1, f_out),
                         ((0, 0), (0, fo_p - f_out)))

    # Tile sizes.
    #   tm = 512 row tile (>= 512 per review; divides n_p by construction).
    #   tn = full padded F_out when moderate -> j grid axis of size 1, so A
    #        streams from HBM exactly once.
    #   tk = whole padded reduction when it fits the VMEM budget (single K
    #        step, no accumulator), else largest even 512-multiple divisor.
    # Worst-case double-buffered f32 working set per phase:
    #   2*tm*tk*4 + 2*tk*tn*4 + 2*tm*tn*4 (+ tm*tn*4 acc) ~= 19-22 MiB,
    # inside v7x's 64 MiB physical VMEM and far inside v5e/v6e's 128 MiB.
    tm = 512
    tn = fo_p if fo_p <= 512 else _largest_dividing(fo_p, (512, 256, 128))
    tk_feat = fi_p if fi_p <= 2048 else _largest_dividing(fi_p, (2048, 1024, 512, 256, 128))
    tk_node = n_p if n_p <= 2048 else _largest_dividing(n_p, (2048, 1024, 512))

    # Phase 1: support = X @ W (small; single K step in the common case).
    support = _tiled_matmul(x_p, w_p, None,
                            tm=tm, tn=tn, tk=tk_feat, out_dtype=jnp.float32)

    # Phase 2: out = A @ support (+ bias fused into the final store).
    out_p = _tiled_matmul(a_p, support, bias_p,
                          tm=tm, tn=tn, tk=tk_node, out_dtype=jnp.float32)

    return out_p[:N, :f_out]


def kaiming_uniform(key, shape):
    # Mirrors torch.nn.init.kaiming_uniform_ with default args:
    # fan_in = shape[1], gain = sqrt(2), bound = sqrt(6 / fan_in).
    fan_in = shape[1]
    bound = math.sqrt(6.0 / fan_in)
    return jax.random.uniform(key, shape, jnp.float32, minval=-bound, maxval=bound)


if __name__ == "__main__":
    key = jax.random.PRNGKey(0)
    k_adj, k_feat, k_w = jax.random.split(key, 3)

    # Small graph: N nodes, input_dim -> output_dim
    N, input_dim, output_dim = 16, 32, 64

    # Deterministic parameters (as per reset_parameters)
    weight = kaiming_uniform(k_w, (input_dim, output_dim))
    bias = jnp.zeros((output_dim,), dtype=jnp.float32)

    # Node features
    features = jax.random.normal(k_feat, (N, input_dim), dtype=jnp.float32)

    # Dense symmetric normalized adjacency with self loops (typical GCN input).
    a = (jax.random.uniform(k_adj, (N, N)) > 0.7).astype(jnp.float32)
    a = jnp.maximum(a, a.T)
    a = a + jnp.eye(N, dtype=jnp.float32)
    deg = jnp.sum(a, axis=1)
    d_inv_sqrt = 1.0 / jnp.sqrt(deg)
    adjacency = a * d_inv_sqrt[:, None] * d_inv_sqrt[None, :]

    out = graph_convolution(adjacency, features, weight, bias)
    out = jax.block_until_ready(out)

    # Reference check in plain JAX (f32).
    ref = adjacency @ (features @ weight) + bias[None, :]
    assert out.shape == (N, output_dim)
    assert jnp.allclose(out, ref, atol=2e-2, rtol=2e-2)

    print("KERNEL_OK")
</pallas_src>

<mosaic_0001>
module attributes {stable_mosaic.version = 11 : i64} {
  func.func @_mm_single_kernel(%arg0: i32, %arg1: i32, %arg2: memref<512x128xf32, #tpu.memory_space<vmem>>, %arg3: memref<128x128xf32, #tpu.memory_space<vmem>>, %arg4: memref<512x128xf32, #tpu.memory_space<vmem>>) attributes {dimension_semantics = [#tpu.dimension_semantics<parallel>, #tpu.dimension_semantics<parallel>], iteration_bounds = array<i64: 1, 1>, scalar_prefetch = 0 : i64, scratch_operands = 0 : i64, tpu.core_type = #tpu.core_type<tc>, window_params = [{transform_indices = @transform_0, window_bounds = array<i64: 512, 128>}, {transform_indices = @transform_1, window_bounds = array<i64: 128, 128>}, {transform_indices = @transform_2, window_bounds = array<i64: 512, 128>}]} {
    %c0 = arith.constant 0 : index
    %c0_0 = arith.constant 0 : index
    %0 = vector.load %arg2[%c0, %c0_0] : memref<512x128xf32, #tpu.memory_space<vmem>>, vector<512x128xf32>
    %c0_1 = arith.constant 0 : index
    %c0_2 = arith.constant 0 : index
    %1 = vector.load %arg3[%c0_1, %c0_2] : memref<128x128xf32, #tpu.memory_space<vmem>>, vector<128x128xf32>
    %cst = arith.constant dense<0.000000e+00> : vector<512x128xf32>
    %2 = tpu.matmul %0, %1, %cst {dimension_numbers = #tpu.dot_dimension_numbers<[1], [0], [0], [1], [0, 0, 1, 1], [], []>} : vector<512x128xf32>, vector<128x128xf32>, vector<512x128xf32> -> vector<512x128xf32>
    %c0_3 = arith.constant 0 : index
    %c0_4 = arith.constant 0 : index
    %3 = vector.load %arg4[%c0_3, %c0_4] : memref<512x128xf32, #tpu.memory_space<vmem>>, vector<512x128xf32>
    tpu.vector_store %arg4[%c0_3, %c0_4], %2 {strides = array<i32>} : memref<512x128xf32, #tpu.memory_space<vmem>>, vector<512x128xf32>,
    return
  }
  func.func @transform_0(%arg0: i32, %arg1: i32) -> (i32, i32) {
    %c0_i32 = arith.constant 0 : i32
    %c0_i32_0 = arith.constant 0 : i32
    return %arg0, %c0_i32 : i32, i32
  }
  func.func @transform_1(%arg0: i32, %arg1: i32) -> (i32, i32) {
    %c0_i32 = arith.constant 0 : i32
    %c0_i32_0 = arith.constant 0 : i32
    return %c0_i32, %arg1 : i32, i32
  }
  func.func @transform_2(%arg0: i32, %arg1: i32) -> (i32, i32) {
    %c0_i32 = arith.constant 0 : i32
    return %arg0, %arg1 : i32, i32
  }
}

</mosaic_0001>

<llo_original>
// kernel: tpu_custom_call.1
$region0: #{tpu_custom_call.1}
  #allocation0 [shape = 'u32[]', space=smem, size = 0x4, offset = 0x4, fixed_abs, tag = 'smem constant byte address 0x4 - core index']
  #allocation1 [shape = 'u32[144,128]{1,0:T(1,128)}', space=vmem, size = 0x12000, scoped, tag = 'internal scratch']
  %s0 = inlined_call_operand.hbm [shape: f32[512,128], index: 0, kind: input, shape index: {}]
  %s1 = inlined_call_operand.hbm [shape: f32[128,128], index: 1, kind: input, shape index: {}]
  %s2 = inlined_call_operand.hbm [shape: f32[512,128], index: 2, kind: output, shape index: {}]
  %s3 = sld [smem:[#allocation0]]
  $region26: #{tpu_custom_call.1} parent=0
    _
  %s5 = ssub.s32 1, %s3
  %s6 = scalar_select 0, %s5, %s3
  $region1: #{tpu_custom_call.1} parent=0
    #allocation2 [shape = 'u8[262144]{0}', space=vmem, size = 0x40000, scoped, tag = 'input window, operand 0, single buffered']
    #allocation3 [shape = 's32[1]{0}', space=sflag, size = 0x4, scoped, tag = 'scoped memory for tpu_custom_call.1']
    #allocation4 [shape = 's32[1]{0}', space=sflag, size = 0x4, scoped, tag = 'scoped memory for tpu_custom_call.1']
    #allocation5 [shape = 'u8[65536]{0}', space=vmem, size = 0x10000, scoped, tag = 'input window, operand 1, single buffered']
    #allocation6 [shape = 's32[1]{0}', space=sflag, size = 0x4, scoped, tag = 'scoped memory for tpu_custom_call.1']
    #allocation7 [shape = 'u8[262144]{0}', space=vmem, size = 0x40000, scoped, tag = 'output window, operand 0, single buffered']
    %7 = vsyncpa [#allocation3], 0
    %8 = vsyncpa [#allocation6], 0
    %9 = vsyncpa [#allocation4], 0
    // Predicated region
    $region2: #{tpu_custom_call.1} parent=1 // pred_check
      _
    $region3: #{tpu_custom_call.1} parent=1 // pred_check_branch
      %11 = sbr.rel (0) target = $region5
    $region4: #{tpu_custom_call.1} parent=1 // pred_region
      %s13 = ssub.s32 8192, 8192
      %14 = vsyncadd [#allocation3], %s13
      %s15 = sshll.u32 [#allocation2], 4
      %s16 = int_to_ptr.vmem [resolvable:$true] %s15
      %21 = dma.hbm_to_vmem [thread:$0]  %s0, 8192, %s16, [#allocation3], 128, 128, 8
    $region5: #{tpu_custom_call.1} parent=1 // pred_fallthru
      _
    // Predicated region
    $region6: #{tpu_custom_call.1} parent=1 // pred_check
      _
    $region7: #{tpu_custom_call.1} parent=1 // pred_check_branch
      %23 = sbr.rel (0) target = $region9
    $region8: #{tpu_custom_call.1} parent=1 // pred_region
      %s25 = ssub.s32 2048, 2048
      %26 = vsyncadd [#allocation6], %s25
      %s27 = sshll.u32 [#allocation5], 4
      %s28 = int_to_ptr.vmem [resolvable:$true] %s27
      %33 = dma.hbm_to_vmem [thread:$0]  %s1, 2048, %s28, [#allocation6], 128, 128, 8
    $region9: #{tpu_custom_call.1} parent=1 // pred_fallthru
      _
    // Predicated region
    $region10: #{tpu_custom_call.1} parent=1 // pred_check
      _
    $region11: #{tpu_custom_call.1} parent=1 // pred_check_branch
      %35 = sbr.rel (0) target = $region13
    $region12: #{tpu_custom_call.1} parent=1 // pred_region
      %36 = dma.done [#allocation3], 8192
    $region13: #{tpu_custom_call.1} parent=1 // pred_fallthru
      _
    // Predicated region
    $region14: #{tpu_custom_call.1} parent=1 // pred_check
      _
    $region15: #{tpu_custom_call.1} parent=1 // pred_check_branch
      %38 = sbr.rel (0) target = $region17
    $region16: #{tpu_custom_call.1} parent=1 // pred_region
      %39 = dma.done [#allocation6], 2048
    $region17: #{tpu_custom_call.1} parent=1 // pred_fallthru
      _
    %v40 = vld [vmem:[#allocation2] sm:$0xff]
    %v41 = vld [vmem:[#allocation2 + $0x8] sm:$0xff]
    %v42 = vld [vmem:[#allocation2 + $0x10] sm:$0xff]
    %v43 = vld [vmem:[#allocation2 + $0x18] sm:$0xff]
    %v44 = vld [vmem:[#allocation2 + $0x20] sm:$0xff]
    %v45 = vld [vmem:[#allocation2 + $0x28] sm:$0xff]
    %v46 = vld [vmem:[#allocation2 + $0x30] sm:$0xff]
    %v47 = vld [vmem:[#allocation2 + $0x38] sm:$0xff]
    %v48 = vld [vmem:[#allocation2 + $0x40] sm:$0xff]
    %v49 = vld [vmem:[#allocation2 + $0x48] sm:$0xff]
    %v50 = vld [vmem:[#allocation2 + $0x50] sm:$0xff]
    %v51 = vld [vmem:[#allocation2 + $0x58] sm:$0xff]
    %v52 = vld [vmem:[#allocation2 + $0x60] sm:$0xff]
    %v53 = vld [vmem:[#allocation2 + $0x68] sm:$0xff]
    %v54 = vld [vmem:[#allocation2 + $0x70] sm:$0xff]
    %v55 = vld [vmem:[#allocation2 + $0x78] sm:$0xff]
    %v56 = vld [vmem:[#allocation2 + $0x80] sm:$0xff]
    %v57 = vld [vmem:[#allocation2 + $0x88] sm:$0xff]
    %v58 = vld [vmem:[#allocation2 + $0x90] sm:$0xff]
    %v59 = vld [vmem:[#allocation2 + $0x98] sm:$0xff]
    %v60 = vld [vmem:[#allocation2 + $0xa0] sm:$0xff]
    %v61 = vld [vmem:[#allocation2 + $0xa8] sm:$0xff]
    %v62 = vld [vmem:[#allocation2 + $0xb0] sm:$0xff]
    %v63 = vld [vmem:[#allocation2 + $0xb8] sm:$0xff]
    %v64 = vld [vmem:[#allocation2 + $0xc0] sm:$0xff]
    %v65 = vld [vmem:[#allocation2 + $0xc8] sm:$0xff]
    %v66 = vld [vmem:[#allocation2 + $0xd0] sm:$0xff]
    %v67 = vld [vmem:[#allocation2 + $0xd8] sm:$0xff]
    %v68 = vld [vmem:[#allocation2 + $0xe0] sm:$0xff]
    %v69 = vld [vmem:[#allocation2 + $0xe8] sm:$0xff]
    %v70 = vld [vmem:[#allocation2 + $0xf0] sm:$0xff]
    %v71 = vld [vmem:[#allocation2 + $0xf8] sm:$0xff]
    %v72 = vld [vmem:[#allocation2 + $0x100] sm:$0xff]
    %v73 = vld [vmem:[#allocation2 + $0x108] sm:$0xff]
    %v74 = vld [vmem:[#allocation2 + $0x110] sm:$0xff]
    %v75 = vld [vmem:[#allocation2 + $0x118] sm:$0xff]
    %v76 = vld [vmem:[#allocation2 + $0x120] sm:$0xff]
    %v77 = vld [vmem:[#allocation2 + $0x128] sm:$0xff]
    %v78 = vld [vmem:[#allocation2 + $0x130] sm:$0xff]
    %v79 = vld [vmem:[#allocation2 + $0x138] sm:$0xff]
    %v80 = vld [vmem:[#allocation2 + $0x140] sm:$0xff]
    %v81 = vld [vmem:[#allocation2 + $0x148] sm:$0xff]
    %v82 = vld [vmem:[#allocation2 + $0x150] sm:$0xff]
    %v83 = vld [vmem:[#allocation2 + $0x158] sm:$0xff]
    %v84 = vld [vmem:[#allocation2 + $0x160] sm:$0xff]
    %v85 = vld [vmem:[#allocation2 + $0x168] sm:$0xff]
    %v86 = vld [vmem:[#allocation2 + $0x170] sm:$0xff]
    %v87 = vld [vmem:[#allocation2 + $0x178] sm:$0xff]
    %v88 = vld [vmem:[#allocation2 + $0x180] sm:$0xff]
    %v89 = vld [vmem:[#allocation2 + $0x188] sm:$0xff]
    %v90 = vld [vmem:[#allocation2 + $0x190] sm:$0xff]
    %v91 = vld [vmem:[#allocation2 + $0x198] sm:$0xff]
    %v92 = vld [vmem:[#allocation2 + $0x1a0] sm:$0xff]
    %v93 = vld [vmem:[#allocation2 + $0x1a8] sm:$0xff]
    %v94 = vld [vmem:[#allocation2 + $0x1b0] sm:$0xff]
    %v95 = vld [vmem:[#allocation2 + $0x1b8] sm:$0xff]
    %v96 = vld [vmem:[#allocation2 + $0x1c0] sm:$0xff]
    %v97 = vld [vmem:[#allocation2 + $0x1c8] sm:$0xff]
    %v98 = vld [vmem:[#allocation2 + $0x1d0] sm:$0xff]
    %v99 = vld [vmem:[#allocation2 + $0x1d8] sm:$0xff]
    %v100 = vld [vmem:[#allocation2 + $0x1e0] sm:$0xff]
    %v101 = vld [vmem:[#allocation2 + $0x1e8] sm:$0xff]
    %v102 = vld [vmem:[#allocation2 + $0x1f0] sm:$0xff]
    %v103 = vld [vmem:[#allocation2 + $0x1f8] sm:$0xff]
    %v104 = vld [vmem:[#allocation5] sm:$0xff]
    %v105 = vld [vmem:[#allocation5 + $0x8] sm:$0xff]
    %v106 = vld [vmem:[#allocation5 + $0x10] sm:$0xff]
    %v107 = vld [vmem:[#allocation5 + $0x18] sm:$0xff]
    %v108 = vld [vmem:[#allocation5 + $0x20] sm:$0xff]
    %v109 = vld [vmem:[#allocation5 + $0x28] sm:$0xff]
    %v110 = vld [vmem:[#allocation5 + $0x30] sm:$0xff]
    %v111 = vld [vmem:[#allocation5 + $0x38] sm:$0xff]
    %v112 = vld [vmem:[#allocation5 + $0x40] sm:$0xff]
    %v113 = vld [vmem:[#allocation5 + $0x48] sm:$0xff]
    %v114 = vld [vmem:[#allocation5 + $0x50] sm:$0xff]
    %v115 = vld [vmem:[#allocation5 + $0x58] sm:$0xff]
    %v116 = vld [vmem:[#allocation5 + $0x60] sm:$0xff]
    %v117 = vld [vmem:[#allocation5 + $0x68] sm:$0xff]
    %v118 = vld [vmem:[#allocation5 + $0x70] sm:$0xff]
    %v119 = vld [vmem:[#allocation5 + $0x78] sm:$0xff]
    %120 = vmatprep.subr.mxu0 0.0
    %121 = vmatpush1.msra.mxu0 %v119
    %122 = vmatprep.subr.mxu0 0.0
    %123 = vmatpush1.msra.mxu0 %v118
    %124 = vmatprep.subr.mxu0 0.0
    %125 = vmatpush1.msra.mxu0 %v117
    %126 = vmatprep.subr.mxu0 0.0
    %127 = vmatpush1.msra.mxu0 %v116
    %128 = vmatprep.subr.mxu0 0.0
    %129 = vmatpush1.msra.mxu0 %v115
    %130 = vmatprep.subr.mxu0 0.0
    %131 = vmatpush1.msra.mxu0 %v114
    %132 = vmatprep.subr.mxu0 0.0
    %133 = vmatpush1.msra.mxu0 %v113
    %134 = vmatprep.subr.mxu0 0.0
    %135 = vmatpush1.msra.mxu0 %v112
    %136 = vmatprep.subr.mxu0 0.0
    %137 = vmatpush1.msra.mxu0 %v111
    %138 = vmatprep.subr.mxu0 0.0
    %139 = vmatpush1.msra.mxu0 %v110
    %140 = vmatprep.subr.mxu0 0.0
    %141 = vmatpush1.msra.mxu0 %v109
    %142 = vmatprep.subr.mxu0 0.0
    %143 = vmatpush1.msra.mxu0 %v108
    %144 = vmatprep.subr.mxu0 0.0
    %145 = vmatpush1.msra.mxu0 %v107
    %146 = vmatprep.subr.mxu0 0.0
    %147 = vmatpush1.msra.mxu0 %v106
    %148 = vmatprep.subr.mxu0 0.0
    %149 = vmatpush1.msra.mxu0 %v105
    %150 = vmatprep.subr.mxu0 0.0
    %151 = vmatpush1.msra.mxu0 %v104
    %152 = vmatprep.subr.mxu0 0.0
    %153 = vmatpush2.msra.mxu0 0.0
    %154 = vmatprep.subr.mxu0 0.0
    %155 = vmatpush2.msra.mxu0 0.0
    %156 = vmatprep.subr.mxu0 0.0
    %157 = vmatpush2.msra.mxu0 0.0
    %158 = vmatprep.subr.mxu0 0.0
    %159 = vmatpush2.msra.mxu0 0.0
    %160 = vmatprep.subr.mxu0 0.0
    %161 = vmatpush2.msra.mxu0 0.0
    %162 = vmatprep.subr.mxu0 0.0
    %163 = vmatpush2.msra.mxu0 0.0
    %164 = vmatprep.subr.mxu0 0.0
    %165 = vmatpush2.msra.mxu0 0.0
    %166 = vmatprep.subr.mxu0 0.0
    %167 = vmatpush2.msra.mxu0 0.0
    %168 = vmatprep.subr.mxu0 0.0
    %169 = vmatpush2.msra.mxu0 0.0
    %170 = vmatprep.subr.mxu0 0.0
    %171 = vmatpush2.msra.mxu0 0.0
    %172 = vmatprep.subr.mxu0 0.0
    %173 = vmatpush2.msra.mxu0 0.0
    %174 = vmatprep.subr.mxu0 0.0
    %175 = vmatpush2.msra.mxu0 0.0
    %176 = vmatprep.subr.mxu0 0.0
    %177 = vmatpush2.msra.mxu0 0.0
    %178 = vmatprep.subr.mxu0 0.0
    %179 = vmatpush2.msra.mxu0 0.0
    %180 = vmatprep.subr.mxu0 0.0
    %181 = vmatpush2.msra.mxu0 0.0
    %182 = vmatprep.subr.mxu0 0.0
    %183 = vmatpush2.msra.mxu0 0.0
    %184 = vmatprep.mubr.f32.mxu0 0.0
    %185 = vmatmul.mubr.f32.gmra.mxu0 %v40
    %v186 = vpop.f32.mrf.mxu0
    %v187 = vadd.f32 0.0, %v186
    %v188 = vpop.f32.mrf.mxu0
    %189 = vmatprep.mubr.f32.mxu0 0.0
    %190 = vmatmul.mubr.f32.gmra.mxu0 %v41
    %v191 = vpop.f32.mrf.mxu0
    %v192 = vadd.f32 0.0, %v191
    %v193 = vpop.f32.mrf.mxu0
    %194 = vmatprep.mubr.f32.mxu0 0.0
    %195 = vmatmul.mubr.f32.gmra.mxu0 %v42
    %v196 = vpop.f32.mrf.mxu0
    %v197 = vadd.f32 0.0, %v196
    %v198 = vpop.f32.mrf.mxu0
    %199 = vmatprep.mubr.f32.mxu0 0.0
    %200 = vmatmul.mubr.f32.gmra.mxu0 %v43
    %v201 = vpop.f32.mrf.mxu0
    %v202 = vadd.f32 0.0, %v201
    %v203 = vpop.f32.mrf.mxu0
    %204 = vmatprep.mubr.f32.mxu0 0.0
    %205 = vmatmul.mubr.f32.gmra.mxu0 %v44
    %v206 = vpop.f32.mrf.mxu0
    %v207 = vadd.f32 0.0, %v206
    %v208 = vpop.f32.mrf.mxu0
    %209 = vmatprep.mubr.f32.mxu0 0.0
    %210 = vmatmul.mubr.f32.gmra.mxu0 %v45
    %v211 = vpop.f32.mrf.mxu0
    %v212 = vadd.f32 0.0, %v211
    %v213 = vpop.f32.mrf.mxu0
    %214 = vmatprep.mubr.f32.mxu0 0.0
    %215 = vmatmul.mubr.f32.gmra.mxu0 %v46
    %v216 = vpop.f32.mrf.mxu0
    %v217 = vadd.f32 0.0, %v216
    %v218 = vpop.f32.mrf.mxu0
    %219 = vmatprep.mubr.f32.mxu0 0.0
    %220 = vmatmul.mubr.f32.gmra.mxu0 %v47
    %v221 = vpop.f32.mrf.mxu0
    %v222 = vadd.f32 0.0, %v221
    %v223 = vpop.f32.mrf.mxu0
    %224 = vmatprep.mubr.f32.mxu0 0.0
    %225 = vmatmul.mubr.f32.gmra.mxu0 %v48
    %v226 = vpop.f32.mrf.mxu0
    %v227 = vadd.f32 0.0, %v226
    %v228 = vpop.f32.mrf.mxu0
    %229 = vmatprep.mubr.f32.mxu0 0.0
    %230 = vmatmul.mubr.f32.gmra.mxu0 %v49
    %v231 = vpop.f32.mrf.mxu0
    %v232 = vadd.f32 0.0, %v231
    %v233 = vpop.f32.mrf.mxu0
    %234 = vmatprep.mubr.f32.mxu0 0.0
    %235 = vmatmul.mubr.f32.gmra.mxu0 %v50
    %v236 = vpop.f32.mrf.mxu0
    %v237 = vadd.f32 0.0, %v236
    %v238 = vpop.f32.mrf.mxu0
    %239 = vmatprep.mubr.f32.mxu0 0.0
    %240 = vmatmul.mubr.f32.gmra.mxu0 %v51
    %v241 = vpop.f32.mrf.mxu0
    %v242 = vadd.f32 0.0, %v241
    %v243 = vpop.f32.mrf.mxu0
    %244 = vmatprep.mubr.f32.mxu0 0.0
    %245 = vmatmul.mubr.f32.gmra.mxu0 %v52
    %v246 = vpop.f32.mrf.mxu0
    %v247 = vadd.f32 0.0, %v246
    %v248 = vpop.f32.mrf.mxu0
    %249 = vmatprep.mubr.f32.mxu0 0.0
    %250 = vmatmul.mubr.f32.gmra.mxu0 %v53
    %v251 = vpop.f32.mrf.mxu0
    %v252 = vadd.f32 0.0, %v251
    %v253 = vpop.f32.mrf.mxu0
    %254 = vmatprep.mubr.f32.mxu0 0.0
    %255 = vmatmul.mubr.f32.gmra.mxu0 %v54
    %v256 = vpop.f32.mrf.mxu0
    %v257 = vadd.f32 0.0, %v256
    %v258 = vpop.f32.mrf.mxu0
    %259 = vmatprep.mubr.f32.mxu0 0.0
    %260 = vmatmul.mubr.f32.gmra.mxu0 %v55
    %v261 = vpop.f32.mrf.mxu0
    %v262 = vadd.f32 0.0, %v261
    %v263 = vpop.f32.mrf.mxu0
    %264 = vmatprep.mubr.f32.mxu0 0.0
    %265 = vmatmul.mubr.f32.gmra.mxu0 %v56
    %v266 = vpop.f32.mrf.mxu0
    %v267 = vadd.f32 0.0, %v266
    %v268 = vpop.f32.mrf.mxu0
    %269 = vmatprep.mubr.f32.mxu0 0.0
    %270 = vmatmul.mubr.f32.gmra.mxu0 %v57
    %v271 = vpop.f32.mrf.mxu0
    %v272 = vadd.f32 0.0, %v271
    %v273 = vpop.f32.mrf.mxu0
    %274 = vmatprep.mubr.f32.mxu0 0.0
    %275 = vmatmul.mubr.f32.gmra.mxu0 %v58
    %v276 = vpop.f32.mrf.mxu0
    %v277 = vadd.f32 0.0, %v276
    %v278 = vpop.f32.mrf.mxu0
    %279 = vmatprep.mubr.f32.mxu0 0.0
    %280 = vmatmul.mubr.f32.gmra.mxu0 %v59
    %v281 = vpop.f32.mrf.mxu0
    %v282 = vadd.f32 0.0, %v281
    %v283 = vpop.f32.mrf.mxu0
    %284 = vmatprep.mubr.f32.mxu0 0.0
    %285 = vmatmul.mubr.f32.gmra.mxu0 %v60
    %v286 = vpop.f32.mrf.mxu0
    %v287 = vadd.f32 0.0, %v286
    %v288 = vpop.f32.mrf.mxu0
    %289 = vmatprep.mubr.f32.mxu0 0.0
    %290 = vmatmul.mubr.f32.gmra.mxu0 %v61
    %v291 = vpop.f32.mrf.mxu0
    %v292 = vadd.f32 0.0, %v291
    %v293 = vpop.f32.mrf.mxu0
    %294 = vmatprep.mubr.f32.mxu0 0.0
    %295 = vmatmul.mubr.f32.gmra.mxu0 %v62
    %v296 = vpop.f32.mrf.mxu0
    %v297 = vadd.f32 0.0, %v296
    %v298 = vpop.f32.mrf.mxu0
    %299 = vmatprep.mubr.f32.mxu0 0.0
    %300 = vmatmul.mubr.f32.gmra.mxu0 %v63
    %v301 = vpop.f32.mrf.mxu0
    %v302 = vadd.f32 0.0, %v301
    %v303 = vpop.f32.mrf.mxu0
    %304 = vmatprep.mubr.f32.mxu0 0.0
    %305 = vmatmul.mubr.f32.gmra.mxu0 %v64
    %v306 = vpop.f32.mrf.mxu0
    %v307 = vadd.f32 0.0, %v306
    %v308 = vpop.f32.mrf.mxu0
    %309 = vmatprep.mubr.f32.mxu0 0.0
    %310 = vmatmul.mubr.f32.gmra.mxu0 %v65
    %v311 = vpop.f32.mrf.mxu0
    %v312 = vadd.f32 0.0, %v311
    %v313 = vpop.f32.mrf.mxu0
    %314 = vmatprep.mubr.f32.mxu0 0.0
    %315 = vmatmul.mubr.f32.gmra.mxu0 %v66
    %v316 = vpop.f32.mrf.mxu0
    %v317 = vadd.f32 0.0, %v316
    %v318 = vpop.f32.mrf.mxu0
    %319 = vmatprep.mubr.f32.mxu0 0.0
    %320 = vmatmul.mubr.f32.gmra.mxu0 %v67
    %v321 = vpop.f32.mrf.mxu0
    %v322 = vadd.f32 0.0, %v321
    %v323 = vpop.f32.mrf.mxu0
    %324 = vmatprep.mubr.f32.mxu0 0.0
    %325 = vmatmul.mubr.f32.gmra.mxu0 %v68
    %v326 = vpop.f32.mrf.mxu0
    %v327 = vadd.f32 0.0, %v326
    %v328 = vpop.f32.mrf.mxu0
    %329 = vmatprep.mubr.f32.mxu0 0.0
    %330 = vmatmul.mubr.f32.gmra.mxu0 %v69
    %v331 = vpop.f32.mrf.mxu0
    %v332 = vadd.f32 0.0, %v331
    %v333 = vpop.f32.mrf.mxu0
    %334 = vmatprep.mubr.f32.mxu0 0.0
    %335 = vmatmul.mubr.f32.gmra.mxu0 %v70
    %v336 = vpop.f32.mrf.mxu0
    %v337 = vadd.f32 0.0, %v336
    %v338 = vpop.f32.mrf.mxu0
    %339 = vmatprep.mubr.f32.mxu0 0.0
    %340 = vmatmul.mubr.f32.gmra.mxu0 %v71
    %v341 = vpop.f32.mrf.mxu0
    %v342 = vadd.f32 0.0, %v341
    %v343 = vpop.f32.mrf.mxu0
    %344 = vmatprep.mubr.f32.mxu0 0.0
    %345 = vmatmul.mubr.f32.gmra.mxu0 %v72
    %v346 = vpop.f32.mrf.mxu0
    %v347 = vadd.f32 0.0, %v346
    %v348 = vpop.f32.mrf.mxu0
    %349 = vmatprep.mubr.f32.mxu0 0.0
    %350 = vmatmul.mubr.f32.gmra.mxu0 %v73
    %v351 = vpop.f32.mrf.mxu0
    %v352 = vadd.f32 0.0, %v351
    %v353 = vpop.f32.mrf.mxu0
    %354 = vmatprep.mubr.f32.mxu0 0.0
    %355 = vmatmul.mubr.f32.gmra.mxu0 %v74
    %v356 = vpop.f32.mrf.mxu0
    %v357 = vadd.f32 0.0, %v356
    %v358 = vpop.f32.mrf.mxu0
    %359 = vmatprep.mubr.f32.mxu0 0.0
    %360 = vmatmul.mubr.f32.gmra.mxu0 %v75
    %v361 = vpop.f32.mrf.mxu0
    %v362 = vadd.f32 0.0, %v361
    %v363 = vpop.f32.mrf.mxu0
    %364 = vmatprep.mubr.f32.mxu0 0.0
    %365 = vmatmul.mubr.f32.gmra.mxu0 %v76
    %v366 = vpop.f32.mrf.mxu0
    %v367 = vadd.f32 0.0, %v366
    %v368 = vpop.f32.mrf.mxu0
    %369 = vmatprep.mubr.f32.mxu0 0.0
    %370 = vmatmul.mubr.f32.gmra.mxu0 %v77
    %v371 = vpop.f32.mrf.mxu0
    %v372 = vadd.f32 0.0, %v371
    %v373 = vpop.f32.mrf.mxu0
    %374 = vmatprep.mubr.f32.mxu0 0.0
    %375 = vmatmul.mubr.f32.gmra.mxu0 %v78
    %v376 = vpop.f32.mrf.mxu0
    %v377 = vadd.f32 0.0, %v376
    %v378 = vpop.f32.mrf.mxu0
    %379 = vmatprep.mubr.f32.mxu0 0.0
    %380 = vmatmul.mubr.f32.gmra.mxu0 %v79
    %v381 = vpop.f32.mrf.mxu0
    %v382 = vadd.f32 0.0, %v381
    %v383 = vpop.f32.mrf.mxu0
    %384 = vmatprep.mubr.f32.mxu0 0.0
    %385 = vmatmul.mubr.f32.gmra.mxu0 %v80
    %v386 = vpop.f32.mrf.mxu0
    %v387 = vadd.f32 0.0, %v386
    %v388 = vpop.f32.mrf.mxu0
    %389 = vmatprep.mubr.f32.mxu0 0.0
    %390 = vmatmul.mubr.f32.gmra.mxu0 %v81
    %v391 = vpop.f32.mrf.mxu0
    %v392 = vadd.f32 0.0, %v391
    %v393 = vpop.f32.mrf.mxu0
    %394 = vmatprep.mubr.f32.mxu0 0.0
    %395 = vmatmul.mubr.f32.gmra.mxu0 %v82
    %v396 = vpop.f32.mrf.mxu0
    %v397 = vadd.f32 0.0, %v396
    %v398 = vpop.f32.mrf.mxu0
    %399 = vmatprep.mubr.f32.mxu0 0.0
    %400 = vmatmul.mubr.f32.gmra.mxu0 %v83
    %v401 = vpop.f32.mrf.mxu0
    %v402 = vadd.f32 0.0, %v401
    %v403 = vpop.f32.mrf.mxu0
    %404 = vmatprep.mubr.f32.mxu0 0.0
    %405 = vmatmul.mubr.f32.gmra.mxu0 %v84
    %v406 = vpop.f32.mrf.mxu0
    %v407 = vadd.f32 0.0, %v406
    %v408 = vpop.f32.mrf.mxu0
    %409 = vmatprep.mubr.f32.mxu0 0.0
    %410 = vmatmul.mubr.f32.gmra.mxu0 %v85
    %v411 = vpop.f32.mrf.mxu0
    %v412 = vadd.f32 0.0, %v411
    %v413 = vpop.f32.mrf.mxu0
    %414 = vmatprep.mubr.f32.mxu0 0.0
    %415 = vmatmul.mubr.f32.gmra.mxu0 %v86
    %v416 = vpop.f32.mrf.mxu0
    %v417 = vadd.f32 0.0, %v416
    %v418 = vpop.f32.mrf.mxu0
    %419 = vmatprep.mubr.f32.mxu0 0.0
    %420 = vmatmul.mubr.f32.gmra.mxu0 %v87
    %v421 = vpop.f32.mrf.mxu0
    %v422 = vadd.f32 0.0, %v421
    %v423 = vpop.f32.mrf.mxu0
    %424 = vmatprep.mubr.f32.mxu0 0.0
    %425 = vmatmul.mubr.f32.gmra.mxu0 %v88
    %v426 = vpop.f32.mrf.mxu0
    %v427 = vadd.f32 0.0, %v426
    %v428 = vpop.f32.mrf.mxu0
    %429 = vmatprep.mubr.f32.mxu0 0.0
    %430 = vmatmul.mubr.f32.gmra.mxu0 %v89
    %v431 = vpop.f32.mrf.mxu0
    %v432 = vadd.f32 0.0, %v431
    %v433 = vpop.f32.mrf.mxu0
    %434 = vmatprep.mubr.f32.mxu0 0.0
    %435 = vmatmul.mubr.f32.gmra.mxu0 %v90
    %v436 = vpop.f32.mrf.mxu0
    %v437 = vadd.f32 0.0, %v436
    %v438 = vpop.f32.mrf.mxu0
    %439 = vmatprep.mubr.f32.mxu0 0.0
    %440 = vmatmul.mubr.f32.gmra.mxu0 %v91
    %v441 = vpop.f32.mrf.mxu0
    %v442 = vadd.f32 0.0, %v441
    %v443 = vpop.f32.mrf.mxu0
    %444 = vmatprep.mubr.f32.mxu0 0.0
    %445 = vmatmul.mubr.f32.gmra.mxu0 %v92
    %v446 = vpop.f32.mrf.mxu0
    %v447 = vadd.f32 0.0, %v446
    %v448 = vpop.f32.mrf.mxu0
    %449 = vmatprep.mubr.f32.mxu0 0.0
    %450 = vmatmul.mubr.f32.gmra.mxu0 %v93
    %v451 = vpop.f32.mrf.mxu0
    %v452 = vadd.f32 0.0, %v451
    %v453 = vpop.f32.mrf.mxu0
    %454 = vmatprep.mubr.f32.mxu0 0.0
    %455 = vmatmul.mubr.f32.gmra.mxu0 %v94
    %v456 = vpop.f32.mrf.mxu0
    %v457 = vadd.f32 0.0, %v456
    %v458 = vpop.f32.mrf.mxu0
    %459 = vmatprep.mubr.f32.mxu0 0.0
    %460 = vmatmul.mubr.f32.gmra.mxu0 %v95
    %v461 = vpop.f32.mrf.mxu0
    %v462 = vadd.f32 0.0, %v461
    %v463 = vpop.f32.mrf.mxu0
    %464 = vmatprep.mubr.f32.mxu0 0.0
    %465 = vmatmul.mubr.f32.gmra.mxu0 %v96
    %v466 = vpop.f32.mrf.mxu0
    %v467 = vadd.f32 0.0, %v466
    %v468 = vpop.f32.mrf.mxu0
    %469 = vmatprep.mubr.f32.mxu0 0.0
    %470 = vmatmul.mubr.f32.gmra.mxu0 %v97
    %v471 = vpop.f32.mrf.mxu0
    %v472 = vadd.f32 0.0, %v471
    %v473 = vpop.f32.mrf.mxu0
    %474 = vmatprep.mubr.f32.mxu0 0.0
    %475 = vmatmul.mubr.f32.gmra.mxu0 %v98
    %v476 = vpop.f32.mrf.mxu0
    %v477 = vadd.f32 0.0, %v476
    %v478 = vpop.f32.mrf.mxu0
    %479 = vmatprep.mubr.f32.mxu0 0.0
    %480 = vmatmul.mubr.f32.gmra.mxu0 %v99
    %v481 = vpop.f32.mrf.mxu0
    %v482 = vadd.f32 0.0, %v481
    %v483 = vpop.f32.mrf.mxu0
    %484 = vmatprep.mubr.f32.mxu0 0.0
    %485 = vmatmul.mubr.f32.gmra.mxu0 %v100
    %v486 = vpop.f32.mrf.mxu0
    %v487 = vadd.f32 0.0, %v486
    %v488 = vpop.f32.mrf.mxu0
    %489 = vmatprep.mubr.f32.mxu0 0.0
    %490 = vmatmul.mubr.f32.gmra.mxu0 %v101
    %v491 = vpop.f32.mrf.mxu0
    %v492 = vadd.f32 0.0, %v491
    %v493 = vpop.f32.mrf.mxu0
    %494 = vmatprep.mubr.f32.mxu0 0.0
    %495 = vmatmul.mubr.f32.gmra.mxu0 %v102
    %v496 = vpop.f32.mrf.mxu0
    %v497 = vadd.f32 0.0, %v496
    %v498 = vpop.f32.mrf.mxu0
    %499 = vmatprep.mubr.f32.mxu0 0.0
    %500 = vmatmul.mubr.f32.gmra.mxu0 %v103
    %v501 = vpop.f32.mrf.mxu0
    %v502 = vadd.f32 0.0, %v501
    %v503 = vpop.f32.mrf.mxu0
    %504 = vdwg.mxu0
    %505 = vst [vmem:[#allocation7] sm:$0xff] %v187
    %506 = vst [vmem:[#allocation7 + $0x8] sm:$0xff] %v192
    %507 = vst [vmem:[#allocation7 + $0x10] sm:$0xff] %v197
    %508 = vst [vmem:[#allocation7 + $0x18] sm:$0xff] %v202
    %509 = vst [vmem:[#allocation7 + $0x20] sm:$0xff] %v207
    %510 = vst [vmem:[#allocation7 + $0x28] sm:$0xff] %v212
    %511 = vst [vmem:[#allocation7 + $0x30] sm:$0xff] %v217
    %512 = vst [vmem:[#allocation7 + $0x38] sm:$0xff] %v222
    %513 = vst [vmem:[#allocation7 + $0x40] sm:$0xff] %v227
    %514 = vst [vmem:[#allocation7 + $0x48] sm:$0xff] %v232
    %515 = vst [vmem:[#allocation7 + $0x50] sm:$0xff] %v237
    %516 = vst [vmem:[#allocation7 + $0x58] sm:$0xff] %v242
    %517 = vst [vmem:[#allocation7 + $0x60] sm:$0xff] %v247
    %518 = vst [vmem:[#allocation7 + $0x68] sm:$0xff] %v252
    %519 = vst [vmem:[#allocation7 + $0x70] sm:$0xff] %v257
    %520 = vst [vmem:[#allocation7 + $0x78] sm:$0xff] %v262
    %521 = vst [vmem:[#allocation7 + $0x80] sm:$0xff] %v267
    %522 = vst [vmem:[#allocation7 + $0x88] sm:$0xff] %v272
    %523 = vst [vmem:[#allocation7 + $0x90] sm:$0xff] %v277
    %524 = vst [vmem:[#allocation7 + $0x98] sm:$0xff] %v282
    %525 = vst [vmem:[#allocation7 + $0xa0] sm:$0xff] %v287
    %526 = vst [vmem:[#allocation7 + $0xa8] sm:$0xff] %v292
    %527 = vst [vmem:[#allocation7 + $0xb0] sm:$0xff] %v297
    %528 = vst [vmem:[#allocation7 + $0xb8] sm:$0xff] %v302
    %529 = vst [vmem:[#allocation7 + $0xc0] sm:$0xff] %v307
    %530 = vst [vmem:[#allocation7 + $0xc8] sm:$0xff] %v312
    %531 = vst [vmem:[#allocation7 + $0xd0] sm:$0xff] %v317
    %532 = vst [vmem:[#allocation7 + $0xd8] sm:$0xff] %v322
    %533 = vst [vmem:[#allocation7 + $0xe0] sm:$0xff] %v327
    %534 = vst [vmem:[#allocation7 + $0xe8] sm:$0xff] %v332
    %535 = vst [vmem:[#allocation7 + $0xf0] sm:$0xff] %v337
    %536 = vst [vmem:[#allocation7 + $0xf8] sm:$0xff] %v342
    %537 = vst [vmem:[#allocation7 + $0x100] sm:$0xff] %v347
    %538 = vst [vmem:[#allocation7 + $0x108] sm:$0xff] %v352
    %539 = vst [vmem:[#allocation7 + $0x110] sm:$0xff] %v357
    %540 = vst [vmem:[#allocation7 + $0x118] sm:$0xff] %v362
    %541 = vst [vmem:[#allocation7 + $0x120] sm:$0xff] %v367
    %542 = vst [vmem:[#allocation7 + $0x128] sm:$0xff] %v372
    %543 = vst [vmem:[#allocation7 + $0x130] sm:$0xff] %v377
    %544 = vst [vmem:[#allocation7 + $0x138] sm:$0xff] %v382
    %545 = vst [vmem:[#allocation7 + $0x140] sm:$0xff] %v387
    %546 = vst [vmem:[#allocation7 + $0x148] sm:$0xff] %v392
    %547 = vst [vmem:[#allocation7 + $0x150] sm:$0xff] %v397
    %548 = vst [vmem:[#allocation7 + $0x158] sm:$0xff] %v402
    %549 = vst [vmem:[#allocation7 + $0x160] sm:$0xff] %v407
    %550 = vst [vmem:[#allocation7 + $0x168] sm:$0xff] %v412
    %551 = vst [vmem:[#allocation7 + $0x170] sm:$0xff] %v417
    %552 = vst [vmem:[#allocation7 + $0x178] sm:$0xff] %v422
    %553 = vst [vmem:[#allocation7 + $0x180] sm:$0xff] %v427
    %554 = vst [vmem:[#allocation7 + $0x188] sm:$0xff] %v432
    %555 = vst [vmem:[#allocation7 + $0x190] sm:$0xff] %v437
    %556 = vst [vmem:[#allocation7 + $0x198] sm:$0xff] %v442
    %557 = vst [vmem:[#allocation7 + $0x1a0] sm:$0xff] %v447
    %558 = vst [vmem:[#allocation7 + $0x1a8] sm:$0xff] %v452
    %559 = vst [vmem:[#allocation7 + $0x1b0] sm:$0xff] %v457
    %560 = vst [vmem:[#allocation7 + $0x1b8] sm:$0xff] %v462
    %561 = vst [vmem:[#allocation7 + $0x1c0] sm:$0xff] %v467
    %562 = vst [vmem:[#allocation7 + $0x1c8] sm:$0xff] %v472
    %563 = vst [vmem:[#allocation7 + $0x1d0] sm:$0xff] %v477
    %564 = vst [vmem:[#allocation7 + $0x1d8] sm:$0xff] %v482
    %565 = vst [vmem:[#allocation7 + $0x1e0] sm:$0xff] %v487
    %566 = vst [vmem:[#allocation7 + $0x1e8] sm:$0xff] %v492
    %567 = vst [vmem:[#allocation7 + $0x1f0] sm:$0xff] %v497
    %568 = vst [vmem:[#allocation7 + $0x1f8] sm:$0xff] %v502
    // Predicated region
    $region18: #{tpu_custom_call.1} parent=1 // pred_check
      _
    $region19: #{tpu_custom_call.1} parent=1 // pred_check_branch
      %570 = sbr.rel (0) target = $region21
    $region20: #{tpu_custom_call.1} parent=1 // pred_region
      %s572 = ssub.s32 8192, 8192
      %573 = vsyncadd [#allocation4], %s572
      %s574 = sshll.u32 [#allocation7], 4
      %s575 = int_to_ptr.vmem [resolvable:$true] %s574
      %580 = dma.vmem_to_hbm [thread:$0]  %s575, 8192, %s2, [#allocation4], 128, 128, 8
    $region21: #{tpu_custom_call.1} parent=1 // pred_fallthru
      _
    // Predicated region
    $region22: #{tpu_custom_call.1} parent=1 // pred_check
      _
    $region23: #{tpu_custom_call.1} parent=1 // pred_check_branch
      %582 = sbr.rel (0) target = $region25
    $region24: #{tpu_custom_call.1} parent=1 // pred_region
      %583 = dma.done [#allocation4], 8192
    $region25: #{tpu_custom_call.1} parent=1 // pred_fallthru
      _
    %584 = vsyncpa [#allocation3], 1
    %585 = vsyncpa [#allocation6], 1
    %586 = vsyncpa [#allocation4], 1

</llo_original>
